<compile_context>
chip_gen: v5e
topology: v5e:2x2
jax: 0.10.0
libtpu: 0.0.40
codegen_flags: <defaults>
</compile_context>

<pallas_src>
import jax
import jax.numpy as jnp
from jax import lax
from jax.experimental import pallas as pl
from jax.experimental.pallas import tpu as pltpu

# ---- Config (VAE.__init__ with small synthetic sizes) -----------------------
N_EMBD = 32                        # gpt2_config.n_embd
FEAT_DIM = N_EMBD * 2              # features_to_hidden input dim = 64
HIDDEN_DIM = 32                    # vae_config.hidden_dim
CONT_DIM = 8                       # latent_spec['cont']
DISC_DIMS = (4, 4)                 # latent_spec['disc']
DISC_TOTAL = sum(DISC_DIMS)        # 8
LATENT_DIM = CONT_DIM + DISC_TOTAL # 16
TEMPERATURE = 0.67                 # only used in the training-mode branch
LANES = 128

OUT_WIDTH = FEAT_DIM + 2 * CONT_DIM + DISC_TOTAL   # 88
OUT_PAD = LANES - OUT_WIDTH                        # 40

# ---- Packed weight buffer layout (rows x 128 cols, all 8-row aligned slots) --
# Columns beyond each weight's true width are zero, so the padded lanes of every
# activation stay exactly zero through ReLU and the fused matmuls stay exact.
R_W1   = 0                    # 64 rows : W1 (64 x 32)          features_to_hidden
R_B1   = R_W1 + FEAT_DIM      # 8 rows  : row 0 = b1 (32)
R_WHD  = R_B1 + 8             # 128-row slot: rows 0..31 = [Wmean|Wlogvar|Walpha0|Walpha1] (32 x 24)
R_BHD  = R_WHD + LANES        # 8 rows  : row 0 = [bmean|blogvar|balpha0|balpha1] (24)
R_WLC  = R_BHD + 8            # 128-row slot: rows 0..7 = WL[:8]  (cont rows of latent_to_hidden)
R_WL01 = R_WLC + LANES        # 8 rows  : WL[8:16] (both discrete groups)
R_BL   = R_WL01 + 8           # 8 rows  : row 0 = bl (32)
R_WH   = R_BL + 8             # 128-row slot: rows 0..31 = WH (32 x 64) hidden_to_features
R_BH   = R_WH + LANES         # 8 rows  : row 0 = bh (64)
TOTAL_ROWS = R_BH + 8         # 488


def vae_kernel(x_ref, w_ref, out_ref):
    f32 = jnp.float32
    x = x_ref[...]                                               # (T, 64)

    # ---- encode: features_to_hidden (Linear + ReLU), lane-padded to 128 wide
    w1 = w_ref[R_W1:R_W1 + FEAT_DIM, :]                          # (64, 128)
    b1 = w_ref[R_B1:R_B1 + 1, :]                                 # (1, 128)
    hidden = jnp.maximum(
        jnp.dot(x, w1, preferred_element_type=f32) + b1, 0.0)    # (T, 128), cols 32.. == 0

    # ---- fused heads: [mean(0:8) | logvar(8:16) | a0 logits(16:20) | a1 logits(20:24) | 0]
    w_hd = w_ref[R_WHD:R_WHD + LANES, :]                         # (128, 128)
    b_hd = w_ref[R_BHD:R_BHD + 1, :]
    heads = jnp.dot(hidden, w_hd, preferred_element_type=f32) + b_hd   # (T, 128)

    # ---- discrete heads: per-group softmax + eval-mode one-hot argmax sample,
    #      done on the contiguous 8-wide logit slab (no lane concat needed).
    logits = heads[:, 2 * CONT_DIM:2 * CONT_DIM + DISC_TOTAL]    # (T, 8)
    col = lax.broadcasted_iota(jnp.int32, logits.shape, 1)
    in_g1 = col >= DISC_DIMS[0]
    neg = f32(-jnp.inf)
    m0 = jnp.max(jnp.where(in_g1, neg, logits), axis=1, keepdims=True)
    m1 = jnp.max(jnp.where(in_g1, logits, neg), axis=1, keepdims=True)
    gmax = jnp.where(in_g1, m1, m0)                              # per-lane group max
    e = jnp.exp(logits - gmax)
    s0 = jnp.sum(jnp.where(in_g1, 0.0, e), axis=1, keepdims=True)
    s1 = jnp.sum(jnp.where(in_g1, e, 0.0), axis=1, keepdims=True)
    denom = jnp.where(in_g1, s1, s0)
    probs = e * pl.reciprocal(denom, approx=True)                # [softmax(a0) | softmax(a1)]

    # one-hot at the FIRST per-group argmax (torch.max tie-break); argmax of the
    # softmax equals argmax of the logits (monotonic), so compute it on the logits.
    sent = jnp.int32(jnp.iinfo(jnp.int32).max)
    cand = jnp.where(logits == gmax, col, sent)
    i0 = jnp.min(jnp.where(in_g1, sent, cand), axis=1, keepdims=True)
    i1 = jnp.min(jnp.where(in_g1, cand, sent), axis=1, keepdims=True)
    onehot = (col == jnp.where(in_g1, i1, i0)).astype(f32)       # (T, 8)

    # ---- decode: latent_to_hidden (Linear + ReLU).  The latent concat is replaced by
    #      heads @ WL_cont_ext (rows 8.. are zero, so only the mean lanes contribute)
    #      plus one (T,8)@(8,128) dot for both discrete one-hots.
    wl_c = w_ref[R_WLC:R_WLC + LANES, :]                         # (128, 128)
    wl_d = w_ref[R_WL01:R_WL01 + DISC_TOTAL, :]                  # (8, 128)
    bl = w_ref[R_BL:R_BL + 1, :]
    h2 = jnp.maximum(
        jnp.dot(heads, wl_c, preferred_element_type=f32)
        + jnp.dot(onehot, wl_d, preferred_element_type=f32)
        + bl, 0.0)                                               # (T, 128), cols 32.. == 0

    # ---- hidden_to_features (Linear + ReLU)
    wh = w_ref[R_WH:R_WH + LANES, :]                             # (128, 128)
    bh = w_ref[R_BH:R_BH + 1, :]
    feat = jnp.maximum(
        jnp.dot(h2, wh, preferred_element_type=f32) + bh, 0.0)   # (T, 128), cols 64.. == 0

    # ---- single lane-dense 128-wide output slab, one unmasked store
    pad = jnp.zeros((x.shape[0], OUT_PAD), f32)
    out_ref[...] = jnp.concatenate(
        [feat[:, :FEAT_DIM], heads[:, :2 * CONT_DIM], probs, pad], axis=1)


def pack_params(params):
    """Pack the 14 (in,out)-layout weights/biases into one (488,128) f32 buffer."""
    (w1, b1, wm, bm, wv, bv, wa0, ba0, wa1, ba1, wl, bl, wh, bh) = params
    buf = jnp.zeros((TOTAL_ROWS, LANES), jnp.float32)

    def put(b, row, a):
        a = jnp.asarray(a, jnp.float32)
        if a.ndim == 1:
            a = a.reshape(1, -1)
        return b.at[row:row + a.shape[0], 0:a.shape[1]].set(a)

    buf = put(buf, R_W1, w1)
    buf = put(buf, R_B1, b1)
    buf = put(buf, R_WHD, jnp.concatenate([wm, wv, wa0, wa1], axis=1))         # (32, 24)
    buf = put(buf, R_BHD, jnp.concatenate(
        [b.reshape(1, -1) for b in (bm, bv, ba0, ba1)], axis=1))               # (1, 24)
    buf = put(buf, R_WLC, wl[:CONT_DIM, :])                                    # (8, 32)
    buf = put(buf, R_WL01, wl[CONT_DIM:, :])                                   # (8, 32)
    buf = put(buf, R_BL, bl)
    buf = put(buf, R_WH, wh)                                                   # (32, 64)
    buf = put(buf, R_BH, bh)
    return buf


def vae_forward(features, params, *, batch_tile=512):
    """features: (N, 2, n_embd) -> (features_output, latent_dist)."""
    n = features.shape[0]
    x = features.reshape(n, -1).astype(jnp.float32)   # .view(batch_size, -1)
    assert x.shape[1] == FEAT_DIM

    # batch tile: multiple of 8 (f32 sublanes); <=512 keeps per-step VMEM well under
    # the v7x 32 MiB scoped default (~1.3 MiB with double-buffering).
    tile = int(min(batch_tile, max(8, -(-n // 8) * 8)))
    tile = max(8, (tile // 8) * 8)
    n_pad = -(-n // tile) * tile
    if n_pad != n:
        x = jnp.pad(x, ((0, n_pad - n), (0, 0)))

    wbuf = pack_params(params)

    out = pl.pallas_call(
        vae_kernel,
        out_shape=jax.ShapeDtypeStruct((n_pad, LANES), jnp.float32),
        grid=(n_pad // tile,),
        in_specs=[
            pl.BlockSpec((tile, FEAT_DIM), lambda i: (i, 0)),         # batch-tiled input
            pl.BlockSpec((TOTAL_ROWS, LANES), lambda i: (0, 0)),      # packed weights (grid-invariant)
        ],
        out_specs=pl.BlockSpec((tile, LANES), lambda i: (i, 0)),
        compiler_params=pltpu.CompilerParams(
            dimension_semantics=("parallel",)),
    )(x, wbuf)

    # slice the lane-dense slab back to the module's logical outputs
    c0 = FEAT_DIM
    c1 = c0 + CONT_DIM
    c2 = c1 + CONT_DIM
    c3 = c2 + DISC_DIMS[0]
    c4 = c3 + DISC_DIMS[1]
    feat = out[:n, :c0]
    mean = out[:n, c0:c1]
    logvar = out[:n, c1:c2]
    a0 = out[:n, c2:c3]
    a1 = out[:n, c3:c4]
    latent_dist = {"cont": [mean, logvar], "disc": [a0, a1]}
    return feat, latent_dist


def vae_reference(features, params):
    """Pure-JAX eval-mode reference (matches the PyTorch module's forward)."""
    (w1, b1, wm, bm, wv, bv, wa0, ba0, wa1, ba1, wl, bl, wh, bh) = params
    n = features.shape[0]
    x = features.reshape(n, -1).astype(jnp.float32)
    hidden = jax.nn.relu(x @ w1 + b1)
    mean = hidden @ wm + bm
    logvar = hidden @ wv + bv
    a0 = jax.nn.softmax(hidden @ wa0 + ba0, axis=1)
    a1 = jax.nn.softmax(hidden @ wa1 + ba1, axis=1)

    def onehot(a):
        return jax.nn.one_hot(jnp.argmax(a, axis=1), a.shape[1], dtype=jnp.float32)

    latent = jnp.concatenate([mean, onehot(a0), onehot(a1)], axis=1)
    h2 = jax.nn.relu(latent @ wl + bl)
    feat = jax.nn.relu(h2 @ wh + bh)
    return feat, mean, logvar, a0, a1


def _init_linear(kw, kb, fan_in, fan_out):
    # deterministic PyTorch-style uniform(-1/sqrt(fan_in), 1/sqrt(fan_in)) init,
    # weights pre-transposed to (in_features, out_features)
    bound = 1.0 / float(fan_in) ** 0.5
    w = jax.random.uniform(kw, (fan_in, fan_out), jnp.float32, -bound, bound)
    b = jax.random.uniform(kb, (1, fan_out), jnp.float32, -bound, bound)
    return w, b


if __name__ == "__main__":
    key = jax.random.PRNGKey(0)
    ks = jax.random.split(key, 15)

    w1, b1 = _init_linear(ks[0], ks[1], FEAT_DIM, HIDDEN_DIM)        # features_to_hidden
    wm, bm = _init_linear(ks[2], ks[3], HIDDEN_DIM, CONT_DIM)        # fc_mean
    wv, bv = _init_linear(ks[4], ks[5], HIDDEN_DIM, CONT_DIM)        # fc_log_var
    wa0, ba0 = _init_linear(ks[6], ks[7], HIDDEN_DIM, DISC_DIMS[0])  # fc_alphas[0]
    wa1, ba1 = _init_linear(ks[8], ks[9], HIDDEN_DIM, DISC_DIMS[1])  # fc_alphas[1]
    wl, bl = _init_linear(ks[10], ks[11], LATENT_DIM, HIDDEN_DIM)    # latent_to_hidden
    wh, bh = _init_linear(ks[12], ks[13], HIDDEN_DIM, FEAT_DIM)      # hidden_to_features
    params = (w1, b1, wm, bm, wv, bv, wa0, ba0, wa1, ba1, wl, bl, wh, bh)

    # features analogous to the GPT2 feature pair: (batch=2, 2, n_embd=32)
    features = jax.random.normal(ks[14], (2, 2, N_EMBD), jnp.float32)

    fwd = jax.jit(vae_forward)
    feat_out, latent_dist = fwd(features, params)
    jax.block_until_ready(feat_out)
    jax.block_until_ready(latent_dist["cont"][0])
    jax.block_until_ready(latent_dist["disc"][0])

    assert feat_out.shape == (2, FEAT_DIM)
    assert latent_dist["cont"][0].shape == (2, CONT_DIM)
    assert latent_dist["cont"][1].shape == (2, CONT_DIM)
    assert latent_dist["disc"][0].shape == (2, DISC_DIMS[0])
    assert latent_dist["disc"][1].shape == (2, DISC_DIMS[1])

    # numerical check vs. pure-JAX reference (tolerance covers the approx reciprocal
    # in the softmax and MXU f32 accumulation-order differences)
    r_feat, r_mean, r_logvar, r_a0, r_a1 = vae_reference(features, params)

    def _close(a, b, tol=5e-3):
        return float(jnp.max(jnp.abs(a - b))) <= tol

    assert _close(feat_out, r_feat)
    assert _close(latent_dist["cont"][0], r_mean)
    assert _close(latent_dist["cont"][1], r_logvar)
    assert _close(latent_dist["disc"][0], r_a0)
    assert _close(latent_dist["disc"][1], r_a1)

    print("KERNEL_OK")
</pallas_src>

<mosaic_0001>
module attributes {stable_mosaic.version = 11 : i64} {
  func.func @vae_kernel(%arg0: i32, %arg1: memref<8x64xf32, #tpu.memory_space<vmem>>, %arg2: memref<488x128xf32, #tpu.memory_space<vmem>>, %arg3: memref<8x128xf32, #tpu.memory_space<vmem>>) attributes {dimension_semantics = [#tpu.dimension_semantics<parallel>], iteration_bounds = array<i64: 1>, scalar_prefetch = 0 : i64, scratch_operands = 0 : i64, tpu.core_type = #tpu.core_type<tc>, window_params = [{transform_indices = @transform_0, window_bounds = array<i64: 8, 64>}, {pipeline_mode = #tpu.pipeline_mode<synchronous>, transform_indices = @transform_1, window_bounds = array<i64: 488, 128>}, {transform_indices = @transform_2, window_bounds = array<i64: 8, 128>}]} {
    %c0 = arith.constant 0 : index
    %c0_0 = arith.constant 0 : index
    %0 = vector.load %arg1[%c0, %c0_0] : memref<8x64xf32, #tpu.memory_space<vmem>>, vector<8x64xf32>
    %c0_1 = arith.constant 0 : index
    %c0_2 = arith.constant 0 : index
    %1 = vector.load %arg2[%c0_1, %c0_2] : memref<488x128xf32, #tpu.memory_space<vmem>>, vector<64x128xf32>
    %c64 = arith.constant 64 : index
    %c0_3 = arith.constant 0 : index
    %2 = vector.load %arg2[%c64, %c0_3] : memref<488x128xf32, #tpu.memory_space<vmem>>, vector<1x128xf32>
    %cst = arith.constant dense<0.000000e+00> : vector<8x128xf32>
    %3 = tpu.matmul %0, %1, %cst {dimension_numbers = #tpu.dot_dimension_numbers<[1], [0], [0], [1], [0, 0, 1, 1], [], []>} : vector<8x64xf32>, vector<64x128xf32>, vector<8x128xf32> -> vector<8x128xf32>
    %4 = vector.broadcast %2 : vector<1x128xf32> to vector<8x128xf32>
    %5 = arith.addf %3, %4 : vector<8x128xf32>
    %cst_4 = arith.constant 0.000000e+00 : f32
    %6 = vector.broadcast %cst_4 : f32 to vector<8x128xf32>
    %7 = arith.maximumf %5, %6 : vector<8x128xf32>
    %c72 = arith.constant 72 : index
    %c0_5 = arith.constant 0 : index
    %8 = vector.load %arg2[%c72, %c0_5] : memref<488x128xf32, #tpu.memory_space<vmem>>, vector<128x128xf32>
    %c200 = arith.constant 200 : index
    %c0_6 = arith.constant 0 : index
    %9 = vector.load %arg2[%c200, %c0_6] : memref<488x128xf32, #tpu.memory_space<vmem>>, vector<1x128xf32>
    %cst_7 = arith.constant dense<0.000000e+00> : vector<8x128xf32>
    %10 = tpu.matmul %7, %8, %cst_7 {dimension_numbers = #tpu.dot_dimension_numbers<[1], [0], [0], [1], [0, 0, 1, 1], [], []>} : vector<8x128xf32>, vector<128x128xf32>, vector<8x128xf32> -> vector<8x128xf32>
    %11 = vector.broadcast %9 : vector<1x128xf32> to vector<8x128xf32>
    %12 = arith.addf %10, %11 : vector<8x128xf32>
    %13 = vector.extract_strided_slice %12 {offsets = [0, 16], sizes = [8, 8], strides = [1, 1]} : vector<8x128xf32> to vector<8x8xf32>
    %14 = tpu.iota {dimensions = array<i32: 1>} : vector<8x8xi32>
    %c4_i32 = arith.constant 4 : i32
    %15 = vector.broadcast %c4_i32 : i32 to vector<8x8xi32>
    %16 = arith.cmpi sge, %14, %15 : vector<8x8xi32>
    %cst_8 = arith.constant 0xFF800000 : f32
    %17 = vector.broadcast %cst_8 : f32 to vector<8x8xf32>
    %18 = arith.select %16, %17, %13 : vector<8x8xi1>, vector<8x8xf32>
    %cst_9 = arith.constant dense<0xFF800000> : vector<8xf32>
    %19 = vector.multi_reduction <maximumf>, %18, %cst_9 [1] : vector<8x8xf32> to vector<8xf32>
    %20 = vector.shape_cast %19 : vector<8xf32> to vector<8x1xf32>
    %cst_10 = arith.constant 0xFF800000 : f32
    %21 = vector.broadcast %cst_10 : f32 to vector<8x8xf32>
    %22 = arith.select %16, %13, %21 : vector<8x8xi1>, vector<8x8xf32>
    %cst_11 = arith.constant dense<0xFF800000> : vector<8xf32>
    %23 = vector.multi_reduction <maximumf>, %22, %cst_11 [1] : vector<8x8xf32> to vector<8xf32>
    %24 = vector.shape_cast %23 : vector<8xf32> to vector<8x1xf32>
    %25 = vector.shape_cast %24 : vector<8x1xf32> to vector<8x1xf32>
    %26 = vector.broadcast %25 : vector<8x1xf32> to vector<8x8xf32>
    %27 = vector.shape_cast %20 : vector<8x1xf32> to vector<8x1xf32>
    %28 = vector.broadcast %27 : vector<8x1xf32> to vector<8x8xf32>
    %29 = arith.select %16, %26, %28 : vector<8x8xi1>, vector<8x8xf32>
    %30 = arith.subf %13, %29 : vector<8x8xf32>
    %31 = math.exp %30 : vector<8x8xf32>
    %cst_12 = arith.constant 0.000000e+00 : f32
    %32 = vector.broadcast %cst_12 : f32 to vector<8x8xf32>
    %33 = arith.select %16, %32, %31 : vector<8x8xi1>, vector<8x8xf32>
    %cst_13 = arith.constant dense<0.000000e+00> : vector<8xf32>
    %34 = vector.multi_reduction <add>, %33, %cst_13 [1] : vector<8x8xf32> to vector<8xf32>
    %35 = vector.shape_cast %34 : vector<8xf32> to vector<8x1xf32>
    %cst_14 = arith.constant 0.000000e+00 : f32
    %36 = vector.broadcast %cst_14 : f32 to vector<8x8xf32>
    %37 = arith.select %16, %31, %36 : vector<8x8xi1>, vector<8x8xf32>
    %cst_15 = arith.constant dense<0.000000e+00> : vector<8xf32>
    %38 = vector.multi_reduction <add>, %37, %cst_15 [1] : vector<8x8xf32> to vector<8xf32>
    %39 = vector.shape_cast %38 : vector<8xf32> to vector<8x1xf32>
    %40 = vector.shape_cast %39 : vector<8x1xf32> to vector<8x1xf32>
    %41 = vector.broadcast %40 : vector<8x1xf32> to vector<8x8xf32>
    %42 = vector.shape_cast %35 : vector<8x1xf32> to vector<8x1xf32>
    %43 = vector.broadcast %42 : vector<8x1xf32> to vector<8x8xf32>
    %44 = arith.select %16, %41, %43 : vector<8x8xi1>, vector<8x8xf32>
    %45 = tpu.reciprocal %44 {approx = true} : vector<8x8xf32> -> vector<8x8xf32>
    %46 = arith.mulf %31, %45 : vector<8x8xf32>
    %47 = arith.cmpf oeq, %13, %29 : vector<8x8xf32>
    %c2147483647_i32 = arith.constant 2147483647 : i32
    %48 = vector.broadcast %c2147483647_i32 : i32 to vector<8x8xi32>
    %49 = arith.select %47, %14, %48 : vector<8x8xi1>, vector<8x8xi32>
    %c2147483647_i32_16 = arith.constant 2147483647 : i32
    %50 = vector.broadcast %c2147483647_i32_16 : i32 to vector<8x8xi32>
    %51 = arith.select %16, %50, %49 : vector<8x8xi1>, vector<8x8xi32>
    %cst_17 = arith.constant dense<2147483647> : vector<8xi32>
    %52 = vector.multi_reduction <minsi>, %51, %cst_17 [1] : vector<8x8xi32> to vector<8xi32>
    %53 = vector.shape_cast %52 : vector<8xi32> to vector<8x1xi32>
    %c2147483647_i32_18 = arith.constant 2147483647 : i32
    %54 = vector.broadcast %c2147483647_i32_18 : i32 to vector<8x8xi32>
    %55 = arith.select %16, %49, %54 : vector<8x8xi1>, vector<8x8xi32>
    %cst_19 = arith.constant dense<2147483647> : vector<8xi32>
    %56 = vector.multi_reduction <minsi>, %55, %cst_19 [1] : vector<8x8xi32> to vector<8xi32>
    %57 = vector.shape_cast %56 : vector<8xi32> to vector<8x1xi32>
    %58 = vector.shape_cast %57 : vector<8x1xi32> to vector<8x1xi32>
    %59 = vector.broadcast %58 : vector<8x1xi32> to vector<8x8xi32>
    %60 = vector.shape_cast %53 : vector<8x1xi32> to vector<8x1xi32>
    %61 = vector.broadcast %60 : vector<8x1xi32> to vector<8x8xi32>
    %62 = arith.select %16, %59, %61 : vector<8x8xi1>, vector<8x8xi32>
    %63 = arith.cmpi eq, %14, %62 : vector<8x8xi32>
    %64 = arith.extui %63 : vector<8x8xi1> to vector<8x8xi32>
    %65 = arith.sitofp %64 : vector<8x8xi32> to vector<8x8xf32>
    %c208 = arith.constant 208 : index
    %c0_20 = arith.constant 0 : index
    %66 = vector.load %arg2[%c208, %c0_20] : memref<488x128xf32, #tpu.memory_space<vmem>>, vector<128x128xf32>
    %c336 = arith.constant 336 : index
    %c0_21 = arith.constant 0 : index
    %67 = vector.load %arg2[%c336, %c0_21] : memref<488x128xf32, #tpu.memory_space<vmem>>, vector<8x128xf32>
    %c344 = arith.constant 344 : index
    %c0_22 = arith.constant 0 : index
    %68 = vector.load %arg2[%c344, %c0_22] : memref<488x128xf32, #tpu.memory_space<vmem>>, vector<1x128xf32>
    %cst_23 = arith.constant dense<0.000000e+00> : vector<8x128xf32>
    %69 = tpu.matmul %12, %66, %cst_23 {dimension_numbers = #tpu.dot_dimension_numbers<[1], [0], [0], [1], [0, 0, 1, 1], [], []>} : vector<8x128xf32>, vector<128x128xf32>, vector<8x128xf32> -> vector<8x128xf32>
    %cst_24 = arith.constant dense<0.000000e+00> : vector<8x128xf32>
    %70 = tpu.matmul %65, %67, %cst_24 {dimension_numbers = #tpu.dot_dimension_numbers<[1], [0], [0], [1], [0, 0, 1, 1], [], []>} : vector<8x8xf32>, vector<8x128xf32>, vector<8x128xf32> -> vector<8x128xf32>
    %71 = arith.addf %69, %70 : vector<8x128xf32>
    %72 = vector.broadcast %68 : vector<1x128xf32> to vector<8x128xf32>
    %73 = arith.addf %71, %72 : vector<8x128xf32>
    %cst_25 = arith.constant 0.000000e+00 : f32
    %74 = vector.broadcast %cst_25 : f32 to vector<8x128xf32>
    %75 = arith.maximumf %73, %74 : vector<8x128xf32>
    %c352 = arith.constant 352 : index
    %c0_26 = arith.constant 0 : index
    %76 = vector.load %arg2[%c352, %c0_26] : memref<488x128xf32, #tpu.memory_space<vmem>>, vector<128x128xf32>
    %c480 = arith.constant 480 : index
    %c0_27 = arith.constant 0 : index
    %77 = vector.load %arg2[%c480, %c0_27] : memref<488x128xf32, #tpu.memory_space<vmem>>, vector<1x128xf32>
    %cst_28 = arith.constant dense<0.000000e+00> : vector<8x128xf32>
    %78 = tpu.matmul %75, %76, %cst_28 {dimension_numbers = #tpu.dot_dimension_numbers<[1], [0], [0], [1], [0, 0, 1, 1], [], []>} : vector<8x128xf32>, vector<128x128xf32>, vector<8x128xf32> -> vector<8x128xf32>
    %79 = vector.broadcast %77 : vector<1x128xf32> to vector<8x128xf32>
    %80 = arith.addf %78, %79 : vector<8x128xf32>
    %cst_29 = arith.constant 0.000000e+00 : f32
    %81 = vector.broadcast %cst_29 : f32 to vector<8x128xf32>
    %82 = arith.maximumf %80, %81 : vector<8x128xf32>
    %cst_30 = arith.constant 0.000000e+00 : f32
    %83 = vector.broadcast %cst_30 : f32 to vector<8x40xf32>
    %84 = vector.extract_strided_slice %82 {offsets = [0, 0], sizes = [8, 64], strides = [1, 1]} : vector<8x128xf32> to vector<8x64xf32>
    %85 = vector.extract_strided_slice %12 {offsets = [0, 0], sizes = [8, 16], strides = [1, 1]} : vector<8x128xf32> to vector<8x16xf32>
    %86 = tpu.concatenate %84, %85, %46, %83 in 1 : vector<8x64xf32>, vector<8x16xf32>, vector<8x8xf32>, vector<8x40xf32> -> vector<8x128xf32>
    %c0_31 = arith.constant 0 : index
    %c0_32 = arith.constant 0 : index
    %87 = vector.load %arg3[%c0_31, %c0_32] : memref<8x128xf32, #tpu.memory_space<vmem>>, vector<8x128xf32>
    tpu.vector_store %arg3[%c0_31, %c0_32], %86 {strides = array<i32>} : memref<8x128xf32, #tpu.memory_space<vmem>>, vector<8x128xf32>,
    return
  }
  func.func @transform_0(%arg0: i32) -> (i32, i32) {
    %c0_i32 = arith.constant 0 : i32
    %c0_i32_0 = arith.constant 0 : i32
    return %arg0, %c0_i32 : i32, i32
  }
  func.func @transform_1(%arg0: i32) -> (i32, i32) {
    %c0_i32 = arith.constant 0 : i32
    %c0_i32_0 = arith.constant 0 : i32
    %c0_i32_1 = arith.constant 0 : i32
    return %c0_i32, %c0_i32_0 : i32, i32
  }
  func.func @transform_2(%arg0: i32) -> (i32, i32) {
    %c0_i32 = arith.constant 0 : i32
    %c0_i32_0 = arith.constant 0 : i32
    return %arg0, %c0_i32 : i32, i32
  }
}

</mosaic_0001>

<llo_original>
// kernel: vae_forward.1
$region0: #{vae_forward.1}
  #allocation0 [shape = 'u32[]', space=smem, size = 0x4, offset = 0x4, fixed_abs, tag = 'smem constant byte address 0x4 - core index']
  #allocation1 [shape = 'u32[72,128]{1,0:T(1,128)}', space=vmem, size = 0x9000, scoped, tag = 'internal scratch']
  %s0 = inlined_call_operand.vmem [shape: f32[8,64], index: 0, kind: input, shape index: {}]
  %s1 = inlined_call_operand.vmem [shape: f32[488,128], index: 1, kind: input, shape index: {}]
  %s2 = inlined_call_operand.vmem [shape: f32[8,128], index: 2, kind: output, shape index: {}]
  %s3 = sld [smem:[#allocation0]]
  $region18: #{vae_forward.1} parent=0
    _
  %s5 = ssub.s32 1, %s3
  %s6 = scalar_select 0, %s5, %s3
  // Predicated region
  $region2: #{vae_forward.1} parent=0 // pred_check
    _
  $region3: #{vae_forward.1} parent=0 // pred_check_branch
    %8 = sbr.rel (0) target = $region5
  $region4: #{vae_forward.1} parent=0 // pred_region
    _
  $region5: #{vae_forward.1} parent=0 // pred_fallthru
    _
  // Predicated region
  $region6: #{vae_forward.1} parent=0 // pred_check
    _
  $region7: #{vae_forward.1} parent=0 // pred_check_branch
    %10 = sbr.rel (0) target = $region9
  $region8: #{vae_forward.1} parent=0 // pred_region
    _
  $region9: #{vae_forward.1} parent=0 // pred_fallthru
    _
  %v11 = vld [vmem:[%s0] sm:$0xff]
  %v12 = vld [vmem:[%s1] sm:$0xff]
  %v13 = vld [vmem:[%s1 + $0x8] sm:$0xff]
  %v14 = vld [vmem:[%s1 + $0x10] sm:$0xff]
  %v15 = vld [vmem:[%s1 + $0x18] sm:$0xff]
  %v16 = vld [vmem:[%s1 + $0x20] sm:$0xff]
  %v17 = vld [vmem:[%s1 + $0x28] sm:$0xff]
  %v18 = vld [vmem:[%s1 + $0x30] sm:$0xff]
  %v19 = vld [vmem:[%s1 + $0x38] sm:$0xff]
  %v20 = vld [vmem:[%s1 + $0x40] sm:$0x1]
  %v21 = vperm.slane %v20, 0
  %vm22 = vcmask 523264
  %v24 = vsel %vm22, %v11, 0
  %26 = vmatpush.msra.mxu0 0.0
  %27 = vmatpush.msra.mxu0 0.0
  %28 = vmatpush.msra.mxu0 0.0
  %29 = vmatpush.msra.mxu0 0.0
  %30 = vmatpush.msra.mxu0 0.0
  %31 = vmatpush.msra.mxu0 0.0
  %32 = vmatpush.msra.mxu0 0.0
  %33 = vmatpush.msra.mxu0 0.0
  %34 = vmatpush.msra.mxu0 %v19
  %35 = vmatpush.msra.mxu0 %v18
  %36 = vmatpush.msra.mxu0 %v17
  %37 = vmatpush.msra.mxu0 %v16
  %38 = vmatpush.msra.mxu0 %v15
  %39 = vmatpush.msra.mxu0 %v14
  %40 = vmatpush.msra.mxu0 %v13
  %41 = vmatpush.msra.mxu0 %v12
  %42 = vmatmul.f32.gmra.mxu0 %v24
  %v43 = vpop.f32.mrf.mxu0
  %v44 = vadd.f32 %v21, %v43
  %45 = vdwg.mxu0
  %v46 = vmax.f32 %v44, 0.0
  %v47 = vld [vmem:[%s1 + $0x48] sm:$0xff]
  %v48 = vld [vmem:[%s1 + $0x50] sm:$0xff]
  %v49 = vld [vmem:[%s1 + $0x58] sm:$0xff]
  %v50 = vld [vmem:[%s1 + $0x60] sm:$0xff]
  %v51 = vld [vmem:[%s1 + $0x68] sm:$0xff]
  %v52 = vld [vmem:[%s1 + $0x70] sm:$0xff]
  %v53 = vld [vmem:[%s1 + $0x78] sm:$0xff]
  %v54 = vld [vmem:[%s1 + $0x80] sm:$0xff]
  %v55 = vld [vmem:[%s1 + $0x88] sm:$0xff]
  %v56 = vld [vmem:[%s1 + $0x90] sm:$0xff]
  %v57 = vld [vmem:[%s1 + $0x98] sm:$0xff]
  %v58 = vld [vmem:[%s1 + $0xa0] sm:$0xff]
  %v59 = vld [vmem:[%s1 + $0xa8] sm:$0xff]
  %v60 = vld [vmem:[%s1 + $0xb0] sm:$0xff]
  %v61 = vld [vmem:[%s1 + $0xb8] sm:$0xff]
  %v62 = vld [vmem:[%s1 + $0xc0] sm:$0xff]
  %v63 = vld [vmem:[%s1 + $0xc8] sm:$0x1]
  %v64 = vperm.slane %v63, 0
  %65 = vmatpush.msra.mxu0 %v62
  %66 = vmatpush.msra.mxu0 %v61
  %67 = vmatpush.msra.mxu0 %v60
  %68 = vmatpush.msra.mxu0 %v59
  %69 = vmatpush.msra.mxu0 %v58
  %70 = vmatpush.msra.mxu0 %v57
  %71 = vmatpush.msra.mxu0 %v56
  %72 = vmatpush.msra.mxu0 %v55
  %73 = vmatpush.msra.mxu0 %v54
  %74 = vmatpush.msra.mxu0 %v53
  %75 = vmatpush.msra.mxu0 %v52
  %76 = vmatpush.msra.mxu0 %v51
  %77 = vmatpush.msra.mxu0 %v50
  %78 = vmatpush.msra.mxu0 %v49
  %79 = vmatpush.msra.mxu0 %v48
  %80 = vmatpush.msra.mxu0 %v47
  %81 = vmatmul.f32.gmra.mxu0 %v46
  %v82 = vpop.f32.mrf.mxu0
  %v83 = vadd.f32 %v64, %v82
  %84 = vdwg.mxu0
  %v85 = vlaneseq
  %v86 = vand.u32 %v85, 127
  %vm87 = vcmp.ge.s32.totalorder %v86, 4
  %89 = vrot.lane.b32.xlu0 %v83, 112
  %v90 = vpop.permute.xlu0 %89
  %v92 = vsel %vm87, -inf, %v90
  %vm93 = vcmask 64512
  %v94 = vsel %vm93, %v92, -inf
  %95 = vmax.xlane.f32.xlu0 %v94
  %v96 = vpop.xlane.xlu0 %95
  %v97 = vsel %vm87, %v90, -inf
  %v98 = vsel %vm93, %v97, -inf
  %99 = vmax.xlane.f32.xlu0 %v98
  %v100 = vpop.xlane.xlu0 %99
  %v101 = vsel %vm87, %v100, %v96
  %103 = vrot.lane.b32.xlu0 %v101, 16
  %v104 = vpop.permute.xlu0 %103
  %v106 = vsub.f32 %v83, %v104
  %v107 = vmul.f32 %v106, 1.442695
  %v108 = vpow.pop %v107
  %110 = vrot.lane.b32.xlu0 %v108, 112
  %v111 = vpop.permute.xlu0 %110
  %v113 = vsel %vm87, 0.0, %v111
  %v114 = vsel %vm93, %v113, 0.0
  %115 = vadd.xlane.f32.xlu0 %v114
  %v116 = vpop.xlane.xlu0 %115
  %v117 = vsel %vm87, %v111, 0.0
  %v118 = vsel %vm93, %v117, 0.0
  %119 = vadd.xlane.f32.xlu0 %v118
  %v120 = vpop.xlane.xlu0 %119
  %v121 = vsel %vm87, %v120, %v116
  %v122 = vrcp.pop %v121
  %124 = vrot.lane.b32.xlu0 %v122, 16
  %v125 = vpop.permute.xlu0 %124
  %v127 = vmul.f32 %v108, %v125
  %vm128 = vcmp.eq.f32.partialorder %v83, %v104
  %129 = vrot.lane.b32.xlu0 %v86, 16
  %v130 = vpop.permute.xlu0 %129
  %v131 = vsel %vm128, %v130, 2147483647
  %132 = vrot.lane.b32.xlu0 %v131, 112
  %v133 = vpop.permute.xlu0 %132
  %v134 = vsel %vm87, 2147483647, %v133
  %v135 = vsel %vm93, %v134, 2147483647
  %v136 = vand.u32 %v135, 65535
  %v137 = vshra.s32 %v135, 16
  %v138 = vcvt.s32.f32 %v136
  %v139 = vcvt.s32.f32 %v137
  %140 = vmin.xlane.f32.xlu0 %v139
  %v141 = vpop.xlane.xlu0 %140
  %vm142 = vcmp.eq.f32.partialorder %v139, %v141
  %v143 = vsel %vm142, %v138, inf
  %144 = vmin.xlane.f32.xlu0 %v143
  %v145 = vpop.xlane.xlu0 %144
  %v146 = vcvt.f32.s32 %v145
  %v147 = vcvt.f32.s32 %v141
  %v148 = vshll.u32 %v147, 16
  %v149 = vadd.s32 %v148, %v146
  %v150 = vsel %vm87, %v133, 2147483647
  %v151 = vsel %vm93, %v150, 2147483647
  %v152 = vand.u32 %v151, 65535
  %v153 = vshra.s32 %v151, 16
  %v154 = vcvt.s32.f32 %v152
  %v155 = vcvt.s32.f32 %v153
  %156 = vmin.xlane.f32.xlu0 %v155
  %v157 = vpop.xlane.xlu0 %156
  %vm158 = vcmp.eq.f32.partialorder %v155, %v157
  %v159 = vsel %vm158, %v154, inf
  %160 = vmin.xlane.f32.xlu0 %v159
  %v161 = vpop.xlane.xlu0 %160
  %v162 = vcvt.f32.s32 %v161
  %v163 = vcvt.f32.s32 %v157
  %v164 = vshll.u32 %v163, 16
  %v165 = vadd.s32 %v164, %v162
  %v166 = vsel %vm87, %v165, %v149
  %vm167 = vcmp.eq.s32.totalorder %v86, %v166
  %v168 = vsel %vm167, 1, 0
  %v169 = vcvt.s32.f32 %v168
  %v170 = vld [vmem:[%s1 + $0xd0] sm:$0xff]
  %v171 = vld [vmem:[%s1 + $0xd8] sm:$0xff]
  %v172 = vld [vmem:[%s1 + $0xe0] sm:$0xff]
  %v173 = vld [vmem:[%s1 + $0xe8] sm:$0xff]
  %v174 = vld [vmem:[%s1 + $0xf0] sm:$0xff]
  %v175 = vld [vmem:[%s1 + $0xf8] sm:$0xff]
  %v176 = vld [vmem:[%s1 + $0x100] sm:$0xff]
  %v177 = vld [vmem:[%s1 + $0x108] sm:$0xff]
  %v178 = vld [vmem:[%s1 + $0x110] sm:$0xff]
  %v179 = vld [vmem:[%s1 + $0x118] sm:$0xff]
  %v180 = vld [vmem:[%s1 + $0x120] sm:$0xff]
  %v181 = vld [vmem:[%s1 + $0x128] sm:$0xff]
  %v182 = vld [vmem:[%s1 + $0x130] sm:$0xff]
  %v183 = vld [vmem:[%s1 + $0x138] sm:$0xff]
  %v184 = vld [vmem:[%s1 + $0x140] sm:$0xff]
  %v185 = vld [vmem:[%s1 + $0x148] sm:$0xff]
  %v186 = vld [vmem:[%s1 + $0x150] sm:$0xff]
  %v187 = vld [vmem:[%s1 + $0x158] sm:$0x1]
  %v189 = vsel %vm93, %v169, 0
  %191 = vmatpush.msra.mxu0 0.0
  %192 = vmatpush.msra.mxu0 0.0
  %193 = vmatpush.msra.mxu0 0.0
  %194 = vmatpush.msra.mxu0 0.0
  %195 = vmatpush.msra.mxu0 0.0
  %196 = vmatpush.msra.mxu0 0.0
  %197 = vmatpush.msra.mxu0 0.0
  %198 = vmatpush.msra.mxu0 0.0
  %199 = vmatpush.msra.mxu0 0.0
  %200 = vmatpush.msra.mxu0 0.0
  %201 = vmatpush.msra.mxu0 0.0
  %202 = vmatpush.msra.mxu0 0.0
  %203 = vmatpush.msra.mxu0 0.0
  %204 = vmatpush.msra.mxu0 0.0
  %205 = vmatpush.msra.mxu0 0.0
  %206 = vmatpush.msra.mxu0 %v186
  %207 = vmatmul.f32.gmra.mxu0 %v189
  %v208 = vpop.f32.mrf.mxu0
  %v209 = vadd.f32 0.0, %v208
  %210 = vdwg.mxu0
  %211 = vmatpush.msra.mxu0 %v185
  %212 = vmatpush.msra.mxu0 %v184
  %213 = vmatpush.msra.mxu0 %v183
  %214 = vmatpush.msra.mxu0 %v182
  %215 = vmatpush.msra.mxu0 %v181
  %216 = vmatpush.msra.mxu0 %v180
  %217 = vmatpush.msra.mxu0 %v179
  %218 = vmatpush.msra.mxu0 %v178
  %219 = vmatpush.msra.mxu0 %v177
  %220 = vmatpush.msra.mxu0 %v176
  %221 = vmatpush.msra.mxu0 %v175
  %222 = vmatpush.msra.mxu0 %v174
  %223 = vmatpush.msra.mxu0 %v173
  %224 = vmatpush.msra.mxu0 %v172
  %225 = vmatpush.msra.mxu0 %v171
  %226 = vmatpush.msra.mxu0 %v170
  %227 = vmatmul.f32.gmra.mxu0 %v83
  %v228 = vpop.f32.mrf.mxu0
  %v229 = vadd.f32 %v209, %v228
  %230 = vdwg.mxu0
  %v231 = vperm.slane %v187, 0
  %v232 = vadd.f32 %v229, %v231
  %v233 = vmax.f32 %v232, 0.0
  %v234 = vld [vmem:[%s1 + $0x160] sm:$0xff]
  %v235 = vld [vmem:[%s1 + $0x168] sm:$0xff]
  %v236 = vld [vmem:[%s1 + $0x170] sm:$0xff]
  %v237 = vld [vmem:[%s1 + $0x178] sm:$0xff]
  %v238 = vld [vmem:[%s1 + $0x180] sm:$0xff]
  %v239 = vld [vmem:[%s1 + $0x188] sm:$0xff]
  %v240 = vld [vmem:[%s1 + $0x190] sm:$0xff]
  %v241 = vld [vmem:[%s1 + $0x198] sm:$0xff]
  %v242 = vld [vmem:[%s1 + $0x1a0] sm:$0xff]
  %v243 = vld [vmem:[%s1 + $0x1a8] sm:$0xff]
  %v244 = vld [vmem:[%s1 + $0x1b0] sm:$0xff]
  %v245 = vld [vmem:[%s1 + $0x1b8] sm:$0xff]
  %v246 = vld [vmem:[%s1 + $0x1c0] sm:$0xff]
  %v247 = vld [vmem:[%s1 + $0x1c8] sm:$0xff]
  %v248 = vld [vmem:[%s1 + $0x1d0] sm:$0xff]
  %v249 = vld [vmem:[%s1 + $0x1d8] sm:$0xff]
  %v250 = vld [vmem:[%s1 + $0x1e0] sm:$0x1]
  %v251 = vperm.slane %v250, 0
  %252 = vmatpush.msra.mxu0 %v249
  %253 = vmatpush.msra.mxu0 %v248
  %254 = vmatpush.msra.mxu0 %v247
  %255 = vmatpush.msra.mxu0 %v246
  %256 = vmatpush.msra.mxu0 %v245
  %257 = vmatpush.msra.mxu0 %v244
  %258 = vmatpush.msra.mxu0 %v243
  %259 = vmatpush.msra.mxu0 %v242
  %260 = vmatpush.msra.mxu0 %v241
  %261 = vmatpush.msra.mxu0 %v240
  %262 = vmatpush.msra.mxu0 %v239
  %263 = vmatpush.msra.mxu0 %v238
  %264 = vmatpush.msra.mxu0 %v237
  %265 = vmatpush.msra.mxu0 %v236
  %266 = vmatpush.msra.mxu0 %v235
  %267 = vmatpush.msra.mxu0 %v234
  %268 = vmatmul.f32.gmra.mxu0 %v233
  %v269 = vpop.f32.mrf.mxu0
  %v270 = vadd.f32 %v251, %v269
  %271 = vdwg.mxu0
  %v272 = vmax.f32 %v270, 0.0
  %273 = vrot.lane.b32.xlu0 %v83, 64
  %v274 = vpop.permute.xlu0 %273
  %277 = vrot.lane.b32.xlu0 %v127, 64
  %v278 = vpop.permute.xlu0 %277
  %v280 = vsel %vm22, %v272, %v274
  %vm281 = vcmask 654336
  %v282 = vsel %vm281, %v280, %v278
  %vm283 = vcmask 719872
  %v284 = vsel %vm283, %v282, 0.0
  %285 = vst [vmem:[%s2] sm:$0xff] %v284
  // Predicated region
  $region10: #{vae_forward.1} parent=0 // pred_check
    _
  $region11: #{vae_forward.1} parent=0 // pred_check_branch
    %287 = sbr.rel (0) target = $region13
  $region12: #{vae_forward.1} parent=0 // pred_region
    _
  $region13: #{vae_forward.1} parent=0 // pred_fallthru
    _
  // Predicated region
  $region14: #{vae_forward.1} parent=0 // pred_check
    _
  $region15: #{vae_forward.1} parent=0 // pred_check_branch
    %289 = sbr.rel (0) target = $region17
  $region16: #{vae_forward.1} parent=0 // pred_region
    _
  $region17: #{vae_forward.1} parent=0 // pred_fallthru
    _

</llo_original>
